<compile_context>
chip_gen: v6e
topology: v6e:2x2x1
jax: 0.10.0
libtpu: 0.0.40
codegen_flags: <defaults>
</compile_context>

<pallas_src>
import math
import jax
import jax.numpy as jnp
from jax import lax
from jax.experimental import pallas as pl
from jax.experimental.pallas import tpu as pltpu


def _round_up(x, m):
    return ((x + m - 1) // m) * m


# Contract last dim of W1 (in_features) against last dim of the native-layout
# x tile (in_features): (h1, ni) x (TB, ni) -> (h1, TB).
_NT_DIMS = (((1,), (1,)), ((), ()))


def ppo_actor_kernel(x_ref, w1_ref, b1_ref, w2_ref, b2_ref,
                     w3_ref, b3_ref, w4_ref, b4_ref, mut_ref):
    cdt = w1_ref.dtype                                   # MXU compute dtype
    x = x_ref[...].astype(cdt)                           # (TB, num_inputs)
    # Layer 1: rhs-transposed matmul puts the batch tile on the lane axis.
    h = jnp.tanh(
        lax.dot_general(w1_ref[...], x, dimension_numbers=_NT_DIMS,
                        preferred_element_type=jnp.float32) + b1_ref[...])
    h = jnp.tanh(jnp.dot(w2_ref[...], h.astype(cdt),
                         preferred_element_type=jnp.float32) + b2_ref[...])
    h = jnp.tanh(jnp.dot(w3_ref[...], h.astype(cdt),
                         preferred_element_type=jnp.float32) + b3_ref[...])
    mu = jnp.tanh(jnp.dot(w4_ref[...], h.astype(cdt),
                          preferred_element_type=jnp.float32) + b4_ref[...])
    mut_ref[...] = mu.astype(mut_ref.dtype)              # (A, TB), lane-dense


def ppo_forward(x, params, *, batch_tile=4096, min_pallas_rows=256,
                compute_dtype=jnp.float32, lane_major_out=False):
    """Pallas-backed equivalent of PPOAgent.forward.

    Default: returns (mu (B, A), std (B, A)) — module-faithful.
    lane_major_out=True: returns (mu (A, B), std (1, A)) so downstream
    consumers can fuse the transpose / broadcast themselves.
    """
    (w1, b1), (w2, b2), (w3, b3), (w4, b4), logstd = params
    B, num_inputs = x.shape
    A = w4.shape[0]

    if B == 0 or B < min_pallas_rows:
        # XLA fast path for empty / tiny batches where launch overhead wins.
        mu, std = ppo_forward_ref(x, params)
        if lane_major_out:
            return mu.T, jnp.exp(logstd)
        return mu, std

    if batch_tile <= 0 or batch_tile % 128 != 0:
        raise ValueError("batch_tile must be a positive multiple of 128")

    b_ceil = _round_up(B, 128)
    tb = min(batch_tile, b_ceil)
    if b_ceil > 128:
        # Guarantee >= 2 grid steps so the "parallel" axis feeds both v7x TCs.
        tb = min(tb, _round_up((b_ceil + 1) // 2, 128))
    n_tiles = -(-B // tb)
    b_out = n_tiles * tb          # padded output width; garbage cols sliced off

    # Weights in MXU compute dtype; biases as f32 column vectors (broadcast
    # along the lane/batch axis in-kernel; elementwise math stays f32 so the
    # kernel is v5e-safe even with bf16 MXU operands).
    w1c, w2c, w3c, w4c = (w.astype(compute_dtype) for w in (w1, w2, w3, w4))
    b1c, b2c, b3c, b4c = (b.astype(jnp.float32).reshape(-1, 1)
                          for b in (b1, b2, b3, b4))

    def const_spec(a):
        # Whole-array block, same block every step -> stays VMEM-resident.
        return pl.BlockSpec(a.shape, lambda i: (0, 0))

    h1, h2, h3 = w1.shape[0], w2.shape[0], w3.shape[0]
    flops = 2 * B * (num_inputs * h1 + h1 * h2 + h2 * h3 + h3 * A)
    transcendentals = B * (h1 + h2 + h3 + A)
    wbytes = sum(int(w.size) * w.dtype.itemsize for w in (w1c, w2c, w3c, w4c))
    bytes_accessed = (B * num_inputs * x.dtype.itemsize
                      + b_out * A * 4 + wbytes + (h1 + h2 + h3 + A) * 4)

    mu_t = pl.pallas_call(
        ppo_actor_kernel,
        out_shape=jax.ShapeDtypeStruct((A, b_out), jnp.float32),
        grid=(n_tiles,),
        in_specs=[
            pl.BlockSpec((tb, num_inputs), lambda i: (i, 0)),   # native x layout
            const_spec(w1c), const_spec(b1c),
            const_spec(w2c), const_spec(b2c),
            const_spec(w3c), const_spec(b3c),
            const_spec(w4c), const_spec(b4c),
        ],
        out_specs=pl.BlockSpec((A, tb), lambda i: (0, i)),
        compiler_params=pltpu.CompilerParams(
            dimension_semantics=("parallel",)),
        cost_estimate=pl.CostEstimate(
            flops=flops, transcendentals=transcendentals,
            bytes_accessed=bytes_accessed),
    )(x, w1c, b1c, w2c, b2c, w3c, b3c, w4c, b4c)

    std_row = jnp.exp(logstd)                     # (1, A): x-independent
    if lane_major_out:
        return mu_t[:, :B], std_row               # no transpose / broadcast
    mu = mu_t[:, :B].T                            # module-faithful (B, A)
    return mu, jnp.broadcast_to(std_row, mu.shape)


def init_params(key, num_inputs, num_actions):
    """Deterministic init matching PPOAgent.__init__ (actor branch), PyTorch layout."""
    h1 = num_inputs * 20
    h3 = num_actions * 10
    h2 = int(math.sqrt(h1 * h3))
    sizes = [(num_inputs, h1), (h1, h2), (h2, h3), (h3, num_actions)]
    params = []
    keys = jax.random.split(key, 2 * len(sizes))
    for i, (fan_in, fan_out) in enumerate(sizes):
        bound = 1.0 / math.sqrt(fan_in)   # PyTorch nn.Linear default init range
        w = jax.random.uniform(keys[2 * i], (fan_out, fan_in),
                               minval=-bound, maxval=bound, dtype=jnp.float32)
        b = jax.random.uniform(keys[2 * i + 1], (fan_out,),
                               minval=-bound, maxval=bound, dtype=jnp.float32)
        params.append((w, b))
    logstd = jnp.full((1, num_actions), -0.5, dtype=jnp.float32)
    return (*params, logstd)


def ppo_forward_ref(x, params):
    """Pure-JAX reference (nn.Linear layout: y = x @ W.T + b)."""
    (w1, b1), (w2, b2), (w3, b3), (w4, b4), logstd = params
    h = jnp.tanh(x @ w1.T + b1)
    h = jnp.tanh(h @ w2.T + b2)
    h = jnp.tanh(h @ w3.T + b3)
    mu = jnp.tanh(h @ w4.T + b4)
    std = jnp.broadcast_to(jnp.exp(logstd), mu.shape)
    return mu, std


if __name__ == "__main__":
    num_inputs = 8
    num_actions = 4

    key = jax.random.PRNGKey(0)
    k_params, k_x1, k_x2 = jax.random.split(key, 3)
    params = init_params(k_params, num_inputs, num_actions)

    # Small batch: one partial 128-wide tile; force the Pallas path.
    x_small = jax.random.normal(k_x1, (2, num_inputs), dtype=jnp.float32)
    mu, std = ppo_forward(x_small, params, min_pallas_rows=0)
    jax.block_until_ready((mu, std))
    mu_ref, std_ref = ppo_forward_ref(x_small, params)
    assert mu.shape == (2, num_actions) and std.shape == (2, num_actions)
    assert jnp.allclose(mu, mu_ref, atol=1e-4, rtol=1e-4)
    assert jnp.allclose(std, std_ref, atol=1e-6, rtol=1e-6)

    # Ragged larger batch: >=2 grid steps enforced, partial last x block.
    x_big = jax.random.normal(k_x2, (300, num_inputs), dtype=jnp.float32)
    mu_b, std_b = ppo_forward(x_big, params, min_pallas_rows=0)
    jax.block_until_ready((mu_b, std_b))
    mu_b_ref, std_b_ref = ppo_forward_ref(x_big, params)
    assert mu_b.shape == (300, num_actions) and std_b.shape == (300, num_actions)
    assert jnp.allclose(mu_b, mu_b_ref, atol=1e-4, rtol=1e-4)
    assert jnp.allclose(std_b, std_b_ref, atol=1e-6, rtol=1e-6)

    # bf16 MXU operands (v6e/v7x win; elementwise stays f32 so v5e-safe too).
    mu_h, _ = ppo_forward(x_big, params, min_pallas_rows=0,
                          compute_dtype=jnp.bfloat16)
    jax.block_until_ready(mu_h)
    assert jnp.allclose(mu_h, mu_b_ref, atol=2e-2, rtol=2e-2)

    # Lane-major output variant (skips final transpose / std broadcast).
    mu_lm, std_lm = ppo_forward(x_big, params, min_pallas_rows=0,
                                lane_major_out=True)
    jax.block_until_ready((mu_lm, std_lm))
    assert mu_lm.shape == (num_actions, 300) and std_lm.shape == (1, num_actions)
    assert jnp.allclose(mu_lm.T, mu_b_ref, atol=1e-4, rtol=1e-4)

    print("KERNEL_OK")
</pallas_src>

<mosaic_0001>
module attributes {stable_mosaic.version = 11 : i64} {
  func.func @ppo_actor_kernel(%arg0: i32, %arg1: memref<128x8xf32, #tpu.memory_space<vmem>>, %arg2: memref<160x8xf32, #tpu.memory_space<vmem>>, %arg3: memref<160x1xf32, #tpu.memory_space<vmem>>, %arg4: memref<80x160xf32, #tpu.memory_space<vmem>>, %arg5: memref<80x1xf32, #tpu.memory_space<vmem>>, %arg6: memref<40x80xf32, #tpu.memory_space<vmem>>, %arg7: memref<40x1xf32, #tpu.memory_space<vmem>>, %arg8: memref<4x40xf32, #tpu.memory_space<vmem>>, %arg9: memref<4x1xf32, #tpu.memory_space<vmem>>, %arg10: memref<4x128xf32, #tpu.memory_space<vmem>>) attributes {dimension_semantics = [#tpu.dimension_semantics<parallel>], iteration_bounds = array<i64: 1>, scalar_prefetch = 0 : i64, scratch_operands = 0 : i64, tpu.core_type = #tpu.core_type<tc>, window_params = [{transform_indices = @transform_0, window_bounds = array<i64: 128, 8>}, {pipeline_mode = #tpu.pipeline_mode<synchronous>, transform_indices = @transform_1, window_bounds = array<i64: 160, 8>}, {pipeline_mode = #tpu.pipeline_mode<synchronous>, transform_indices = @transform_2, window_bounds = array<i64: 160, 1>}, {pipeline_mode = #tpu.pipeline_mode<synchronous>, transform_indices = @transform_3, window_bounds = array<i64: 80, 160>}, {pipeline_mode = #tpu.pipeline_mode<synchronous>, transform_indices = @transform_4, window_bounds = array<i64: 80, 1>}, {pipeline_mode = #tpu.pipeline_mode<synchronous>, transform_indices = @transform_5, window_bounds = array<i64: 40, 80>}, {pipeline_mode = #tpu.pipeline_mode<synchronous>, transform_indices = @transform_6, window_bounds = array<i64: 40, 1>}, {pipeline_mode = #tpu.pipeline_mode<synchronous>, transform_indices = @transform_7, window_bounds = array<i64: 4, 40>}, {pipeline_mode = #tpu.pipeline_mode<synchronous>, transform_indices = @transform_8, window_bounds = array<i64: 4, 1>}, {transform_indices = @transform_9, window_bounds = array<i64: 4, 128>}]} {
    %c0 = arith.constant 0 : index
    %c0_0 = arith.constant 0 : index
    %0 = vector.load %arg1[%c0, %c0_0] : memref<128x8xf32, #tpu.memory_space<vmem>>, vector<128x8xf32>
    %c0_1 = arith.constant 0 : index
    %c0_2 = arith.constant 0 : index
    %1 = vector.load %arg2[%c0_1, %c0_2] : memref<160x8xf32, #tpu.memory_space<vmem>>, vector<160x8xf32>
    %cst = arith.constant dense<0.000000e+00> : vector<160x128xf32>
    %2 = tpu.matmul %1, %0, %cst {dimension_numbers = #tpu.dot_dimension_numbers<[1], [1], [0], [0], [0, 0, 1, 0], [], []>} : vector<160x8xf32>, vector<128x8xf32>, vector<160x128xf32> -> vector<160x128xf32>
    %c0_3 = arith.constant 0 : index
    %c0_4 = arith.constant 0 : index
    %3 = vector.load %arg3[%c0_3, %c0_4] : memref<160x1xf32, #tpu.memory_space<vmem>>, vector<160x1xf32>
    %4 = vector.broadcast %3 : vector<160x1xf32> to vector<160x128xf32>
    %5 = arith.addf %2, %4 : vector<160x128xf32>
    %6 = math.tanh %5 : vector<160x128xf32>
    %c0_5 = arith.constant 0 : index
    %c0_6 = arith.constant 0 : index
    %7 = vector.load %arg4[%c0_5, %c0_6] : memref<80x160xf32, #tpu.memory_space<vmem>>, vector<80x160xf32>
    %cst_7 = arith.constant dense<0.000000e+00> : vector<80x128xf32>
    %8 = tpu.matmul %7, %6, %cst_7 {dimension_numbers = #tpu.dot_dimension_numbers<[1], [0], [0], [1], [0, 0, 1, 1], [], []>} : vector<80x160xf32>, vector<160x128xf32>, vector<80x128xf32> -> vector<80x128xf32>
    %c0_8 = arith.constant 0 : index
    %c0_9 = arith.constant 0 : index
    %9 = vector.load %arg5[%c0_8, %c0_9] : memref<80x1xf32, #tpu.memory_space<vmem>>, vector<80x1xf32>
    %10 = vector.broadcast %9 : vector<80x1xf32> to vector<80x128xf32>
    %11 = arith.addf %8, %10 : vector<80x128xf32>
    %12 = math.tanh %11 : vector<80x128xf32>
    %c0_10 = arith.constant 0 : index
    %c0_11 = arith.constant 0 : index
    %13 = vector.load %arg6[%c0_10, %c0_11] : memref<40x80xf32, #tpu.memory_space<vmem>>, vector<40x80xf32>
    %cst_12 = arith.constant dense<0.000000e+00> : vector<40x128xf32>
    %14 = tpu.matmul %13, %12, %cst_12 {dimension_numbers = #tpu.dot_dimension_numbers<[1], [0], [0], [1], [0, 0, 1, 1], [], []>} : vector<40x80xf32>, vector<80x128xf32>, vector<40x128xf32> -> vector<40x128xf32>
    %c0_13 = arith.constant 0 : index
    %c0_14 = arith.constant 0 : index
    %15 = vector.load %arg7[%c0_13, %c0_14] : memref<40x1xf32, #tpu.memory_space<vmem>>, vector<40x1xf32>
    %16 = vector.broadcast %15 : vector<40x1xf32> to vector<40x128xf32>
    %17 = arith.addf %14, %16 : vector<40x128xf32>
    %18 = math.tanh %17 : vector<40x128xf32>
    %c0_15 = arith.constant 0 : index
    %c0_16 = arith.constant 0 : index
    %19 = vector.load %arg8[%c0_15, %c0_16] : memref<4x40xf32, #tpu.memory_space<vmem>>, vector<4x40xf32>
    %cst_17 = arith.constant dense<0.000000e+00> : vector<4x128xf32>
    %20 = tpu.matmul %19, %18, %cst_17 {dimension_numbers = #tpu.dot_dimension_numbers<[1], [0], [0], [1], [0, 0, 1, 1], [], []>} : vector<4x40xf32>, vector<40x128xf32>, vector<4x128xf32> -> vector<4x128xf32>
    %c0_18 = arith.constant 0 : index
    %c0_19 = arith.constant 0 : index
    %21 = vector.load %arg9[%c0_18, %c0_19] : memref<4x1xf32, #tpu.memory_space<vmem>>, vector<4x1xf32>
    %22 = vector.broadcast %21 : vector<4x1xf32> to vector<4x128xf32>
    %23 = arith.addf %20, %22 : vector<4x128xf32>
    %24 = math.tanh %23 : vector<4x128xf32>
    %c0_20 = arith.constant 0 : index
    %c0_21 = arith.constant 0 : index
    %25 = vector.load %arg10[%c0_20, %c0_21] : memref<4x128xf32, #tpu.memory_space<vmem>>, vector<4x128xf32>
    tpu.vector_store %arg10[%c0_20, %c0_21], %24 {strides = array<i32>} : memref<4x128xf32, #tpu.memory_space<vmem>>, vector<4x128xf32>,
    return
  }
  func.func @transform_0(%arg0: i32) -> (i32, i32) {
    %c0_i32 = arith.constant 0 : i32
    %c0_i32_0 = arith.constant 0 : i32
    return %arg0, %c0_i32 : i32, i32
  }
  func.func @transform_1(%arg0: i32) -> (i32, i32) {
    %c0_i32 = arith.constant 0 : i32
    %c0_i32_0 = arith.constant 0 : i32
    %c0_i32_1 = arith.constant 0 : i32
    return %c0_i32, %c0_i32_0 : i32, i32
  }
  func.func @transform_2(%arg0: i32) -> (i32, i32) {
    %c0_i32 = arith.constant 0 : i32
    %c0_i32_0 = arith.constant 0 : i32
    %c0_i32_1 = arith.constant 0 : i32
    return %c0_i32, %c0_i32_0 : i32, i32
  }
  func.func @transform_3(%arg0: i32) -> (i32, i32) {
    %c0_i32 = arith.constant 0 : i32
    %c0_i32_0 = arith.constant 0 : i32
    %c0_i32_1 = arith.constant 0 : i32
    return %c0_i32, %c0_i32_0 : i32, i32
  }
  func.func @transform_4(%arg0: i32) -> (i32, i32) {
    %c0_i32 = arith.constant 0 : i32
    %c0_i32_0 = arith.constant 0 : i32
    %c0_i32_1 = arith.constant 0 : i32
    return %c0_i32, %c0_i32_0 : i32, i32
  }
  func.func @transform_5(%arg0: i32) -> (i32, i32) {
    %c0_i32 = arith.constant 0 : i32
    %c0_i32_0 = arith.constant 0 : i32
    %c0_i32_1 = arith.constant 0 : i32
    return %c0_i32, %c0_i32_0 : i32, i32
  }
  func.func @transform_6(%arg0: i32) -> (i32, i32) {
    %c0_i32 = arith.constant 0 : i32
    %c0_i32_0 = arith.constant 0 : i32
    %c0_i32_1 = arith.constant 0 : i32
    return %c0_i32, %c0_i32_0 : i32, i32
  }
  func.func @transform_7(%arg0: i32) -> (i32, i32) {
    %c0_i32 = arith.constant 0 : i32
    %c0_i32_0 = arith.constant 0 : i32
    %c0_i32_1 = arith.constant 0 : i32
    return %c0_i32, %c0_i32_0 : i32, i32
  }
  func.func @transform_8(%arg0: i32) -> (i32, i32) {
    %c0_i32 = arith.constant 0 : i32
    %c0_i32_0 = arith.constant 0 : i32
    %c0_i32_1 = arith.constant 0 : i32
    return %c0_i32, %c0_i32_0 : i32, i32
  }
  func.func @transform_9(%arg0: i32) -> (i32, i32) {
    %c0_i32 = arith.constant 0 : i32
    %c0_i32_0 = arith.constant 0 : i32
    return %c0_i32, %arg0 : i32, i32
  }
}

</mosaic_0001>

<llo_original>
// kernel: tpu_custom_call.1
$region0: #{tpu_custom_call.1}
  #allocation0 [shape = 'u32[]', space=smem, size = 0x4, offset = 0x4, fixed_abs, tag = 'smem constant byte address 0x4 - core index']
  #allocation1 [shape = 'u32[144,128]{1,0:T(1,128)}', space=vmem, size = 0x12000, scoped, tag = 'internal scratch']
  %s0 = inlined_call_operand.vmem [shape: f32[2,8], index: 0, kind: input, shape index: {}]
  %s1 = inlined_call_operand.vmem [shape: f32[160,8], index: 1, kind: input, shape index: {}]
  %s2 = inlined_call_operand.vmem [shape: f32[160,1], index: 2, kind: input, shape index: {}]
  %s3 = inlined_call_operand.vmem [shape: f32[80,160], index: 3, kind: input, shape index: {}]
  %s4 = inlined_call_operand.vmem [shape: f32[80,1], index: 4, kind: input, shape index: {}]
  %s5 = inlined_call_operand.vmem [shape: f32[40,80], index: 5, kind: input, shape index: {}]
  %s6 = inlined_call_operand.vmem [shape: f32[40,1], index: 6, kind: input, shape index: {}]
  %s7 = inlined_call_operand.vmem [shape: f32[4,40], index: 7, kind: input, shape index: {}]
  %s8 = inlined_call_operand.vmem [shape: f32[4,1], index: 8, kind: input, shape index: {}]
  %s9 = inlined_call_operand.hbm [shape: f32[4,128], index: 9, kind: output, shape index: {}]
  %s10 = sld [smem:[#allocation0]]
  $region46: #{tpu_custom_call.1} parent=0
    _
  %s12 = ssub.s32 1, %s10
  %s13 = scalar_select 0, %s12, %s10
  $region1: #{tpu_custom_call.1} parent=0
    #allocation2 [shape = 'u8[2048]{0}', space=vmem, size = 0x800, scoped, tag = 'output window, operand 0, single buffered']
    #allocation3 [shape = 's32[1]{0}', space=sflag, size = 0x4, scoped, tag = 'scoped memory for tpu_custom_call.1']
    %14 = vsyncpa [#allocation3], 0
    // Predicated region
    $region2: #{tpu_custom_call.1} parent=1 // pred_check
      _
    $region3: #{tpu_custom_call.1} parent=1 // pred_check_branch
      %16 = sbr.rel (0) target = $region5
    $region4: #{tpu_custom_call.1} parent=1 // pred_region
      _
    $region5: #{tpu_custom_call.1} parent=1 // pred_fallthru
      _
    // Predicated region
    $region6: #{tpu_custom_call.1} parent=1 // pred_check
      _
    $region7: #{tpu_custom_call.1} parent=1 // pred_check_branch
      %18 = sbr.rel (0) target = $region9
    $region8: #{tpu_custom_call.1} parent=1 // pred_region
      _
    $region9: #{tpu_custom_call.1} parent=1 // pred_fallthru
      _
    // Predicated region
    $region10: #{tpu_custom_call.1} parent=1 // pred_check
      _
    $region11: #{tpu_custom_call.1} parent=1 // pred_check_branch
      %20 = sbr.rel (0) target = $region13
    $region12: #{tpu_custom_call.1} parent=1 // pred_region
      _
    $region13: #{tpu_custom_call.1} parent=1 // pred_fallthru
      _
    // Predicated region
    $region14: #{tpu_custom_call.1} parent=1 // pred_check
      _
    $region15: #{tpu_custom_call.1} parent=1 // pred_check_branch
      %22 = sbr.rel (0) target = $region17
    $region16: #{tpu_custom_call.1} parent=1 // pred_region
      _
    $region17: #{tpu_custom_call.1} parent=1 // pred_fallthru
      _
    // Predicated region
    $region18: #{tpu_custom_call.1} parent=1 // pred_check
      _
    $region19: #{tpu_custom_call.1} parent=1 // pred_check_branch
      %24 = sbr.rel (0) target = $region21
    $region20: #{tpu_custom_call.1} parent=1 // pred_region
      _
    $region21: #{tpu_custom_call.1} parent=1 // pred_fallthru
      _
    // Predicated region
    $region22: #{tpu_custom_call.1} parent=1 // pred_check
      _
    $region23: #{tpu_custom_call.1} parent=1 // pred_check_branch
      %26 = sbr.rel (0) target = $region25
    $region24: #{tpu_custom_call.1} parent=1 // pred_region
      _
    $region25: #{tpu_custom_call.1} parent=1 // pred_fallthru
      _
    // Predicated region
    $region26: #{tpu_custom_call.1} parent=1 // pred_check
      _
    $region27: #{tpu_custom_call.1} parent=1 // pred_check_branch
      %28 = sbr.rel (0) target = $region29
    $region28: #{tpu_custom_call.1} parent=1 // pred_region
      _
    $region29: #{tpu_custom_call.1} parent=1 // pred_fallthru
      _
    // Predicated region
    $region30: #{tpu_custom_call.1} parent=1 // pred_check
      _
    $region31: #{tpu_custom_call.1} parent=1 // pred_check_branch
      %30 = sbr.rel (0) target = $region33
    $region32: #{tpu_custom_call.1} parent=1 // pred_region
      _
    $region33: #{tpu_custom_call.1} parent=1 // pred_fallthru
      _
    // Predicated region
    $region34: #{tpu_custom_call.1} parent=1 // pred_check
      _
    $region35: #{tpu_custom_call.1} parent=1 // pred_check_branch
      %32 = sbr.rel (0) target = $region37
    $region36: #{tpu_custom_call.1} parent=1 // pred_region
      _
    $region37: #{tpu_custom_call.1} parent=1 // pred_fallthru
      _
    %v33 = vld [vmem:[%s0] sm:$0xff]
    %v34 = vld [vmem:[%s0 + $0x8] sm:$0xff]
    %v35 = vld [vmem:[%s0 + $0x10] sm:$0xff]
    %v36 = vld [vmem:[%s0 + $0x18] sm:$0xff]
    %v37 = vld [vmem:[%s0 + $0x20] sm:$0xff]
    %v38 = vld [vmem:[%s0 + $0x28] sm:$0xff]
    %v39 = vld [vmem:[%s0 + $0x30] sm:$0xff]
    %v40 = vld [vmem:[%s0 + $0x38] sm:$0xff]
    %v41 = vld [vmem:[%s0 + $0x40] sm:$0xff]
    %v42 = vld [vmem:[%s0 + $0x48] sm:$0xff]
    %v43 = vld [vmem:[%s0 + $0x50] sm:$0xff]
    %v44 = vld [vmem:[%s0 + $0x58] sm:$0xff]
    %v45 = vld [vmem:[%s0 + $0x60] sm:$0xff]
    %v46 = vld [vmem:[%s0 + $0x68] sm:$0xff]
    %v47 = vld [vmem:[%s0 + $0x70] sm:$0xff]
    %v48 = vld [vmem:[%s0 + $0x78] sm:$0xff]
    %v49 = vld [vmem:[%s1] sm:$0xff]
    %v50 = vld [vmem:[%s1 + $0x8] sm:$0xff]
    %v51 = vld [vmem:[%s1 + $0x10] sm:$0xff]
    %v52 = vld [vmem:[%s1 + $0x18] sm:$0xff]
    %v53 = vld [vmem:[%s1 + $0x20] sm:$0xff]
    %v54 = vld [vmem:[%s1 + $0x28] sm:$0xff]
    %v55 = vld [vmem:[%s1 + $0x30] sm:$0xff]
    %v56 = vld [vmem:[%s1 + $0x38] sm:$0xff]
    %v57 = vld [vmem:[%s1 + $0x40] sm:$0xff]
    %v58 = vld [vmem:[%s1 + $0x48] sm:$0xff]
    %v59 = vld [vmem:[%s1 + $0x50] sm:$0xff]
    %v60 = vld [vmem:[%s1 + $0x58] sm:$0xff]
    %v61 = vld [vmem:[%s1 + $0x60] sm:$0xff]
    %v62 = vld [vmem:[%s1 + $0x68] sm:$0xff]
    %v63 = vld [vmem:[%s1 + $0x70] sm:$0xff]
    %v64 = vld [vmem:[%s1 + $0x78] sm:$0xff]
    %v65 = vld [vmem:[%s1 + $0x80] sm:$0xff]
    %v66 = vld [vmem:[%s1 + $0x88] sm:$0xff]
    %v67 = vld [vmem:[%s1 + $0x90] sm:$0xff]
    %v68 = vld [vmem:[%s1 + $0x98] sm:$0xff]
    %v69 = vld [vmem:[%s2] sm:$0xff]
    %v70 = vld [vmem:[%s2 + $0x8] sm:$0xff]
    %v71 = vld [vmem:[%s2 + $0x10] sm:$0xff]
    %v72 = vld [vmem:[%s2 + $0x18] sm:$0xff]
    %v73 = vld [vmem:[%s2 + $0x20] sm:$0xff]
    %v74 = vld [vmem:[%s2 + $0x28] sm:$0xff]
    %v75 = vld [vmem:[%s2 + $0x30] sm:$0xff]
    %v76 = vld [vmem:[%s2 + $0x38] sm:$0xff]
    %v77 = vld [vmem:[%s2 + $0x40] sm:$0xff]
    %v78 = vld [vmem:[%s2 + $0x48] sm:$0xff]
    %v79 = vld [vmem:[%s2 + $0x50] sm:$0xff]
    %v80 = vld [vmem:[%s2 + $0x58] sm:$0xff]
    %v81 = vld [vmem:[%s2 + $0x60] sm:$0xff]
    %v82 = vld [vmem:[%s2 + $0x68] sm:$0xff]
    %v83 = vld [vmem:[%s2 + $0x70] sm:$0xff]
    %v84 = vld [vmem:[%s2 + $0x78] sm:$0xff]
    %v85 = vld [vmem:[%s2 + $0x80] sm:$0xff]
    %v86 = vld [vmem:[%s2 + $0x88] sm:$0xff]
    %v87 = vld [vmem:[%s2 + $0x90] sm:$0xff]
    %v88 = vld [vmem:[%s2 + $0x98] sm:$0xff]
    %90 = vset.pattern.permute.xlu0 0
    %91 = vperm.xlu0 %90, %v69
    %v92 = vpop.permute.xlu0 %91
    %95 = vset.pattern.permute.xlu0 0
    %96 = vperm.xlu0 %95, %v70
    %v97 = vpop.permute.xlu0 %96
    %100 = vset.pattern.permute.xlu0 0
    %101 = vperm.xlu0 %100, %v71
    %v102 = vpop.permute.xlu0 %101
    %105 = vset.pattern.permute.xlu0 0
    %106 = vperm.xlu0 %105, %v72
    %v107 = vpop.permute.xlu0 %106
    %110 = vset.pattern.permute.xlu0 0
    %111 = vperm.xlu0 %110, %v73
    %v112 = vpop.permute.xlu0 %111
    %115 = vset.pattern.permute.xlu0 0
    %116 = vperm.xlu0 %115, %v74
    %v117 = vpop.permute.xlu0 %116
    %120 = vset.pattern.permute.xlu0 0
    %121 = vperm.xlu0 %120, %v75
    %v122 = vpop.permute.xlu0 %121
    %125 = vset.pattern.permute.xlu0 0
    %126 = vperm.xlu0 %125, %v76
    %v127 = vpop.permute.xlu0 %126
    %130 = vset.pattern.permute.xlu0 0
    %131 = vperm.xlu0 %130, %v77
    %v132 = vpop.permute.xlu0 %131
    %135 = vset.pattern.permute.xlu0 0
    %136 = vperm.xlu0 %135, %v78
    %v137 = vpop.permute.xlu0 %136
    %140 = vset.pattern.permute.xlu0 0
    %141 = vperm.xlu0 %140, %v79
    %v142 = vpop.permute.xlu0 %141
    %145 = vset.pattern.permute.xlu0 0
    %146 = vperm.xlu0 %145, %v80
    %v147 = vpop.permute.xlu0 %146
    %150 = vset.pattern.permute.xlu0 0
    %151 = vperm.xlu0 %150, %v81
    %v152 = vpop.permute.xlu0 %151
    %155 = vset.pattern.permute.xlu0 0
    %156 = vperm.xlu0 %155, %v82
    %v157 = vpop.permute.xlu0 %156
    %160 = vset.pattern.permute.xlu0 0
    %161 = vperm.xlu0 %160, %v83
    %v162 = vpop.permute.xlu0 %161
    %165 = vset.pattern.permute.xlu0 0
    %166 = vperm.xlu0 %165, %v84
    %v167 = vpop.permute.xlu0 %166
    %170 = vset.pattern.permute.xlu0 0
    %171 = vperm.xlu0 %170, %v85
    %v172 = vpop.permute.xlu0 %171
    %175 = vset.pattern.permute.xlu0 0
    %176 = vperm.xlu0 %175, %v86
    %v177 = vpop.permute.xlu0 %176
    %180 = vset.pattern.permute.xlu0 0
    %181 = vperm.xlu0 %180, %v87
    %v182 = vpop.permute.xlu0 %181
    %185 = vset.pattern.permute.xlu0 0
    %186 = vperm.xlu0 %185, %v88
    %v187 = vpop.permute.xlu0 %186
    %vm189 = vcmask 64512
    %v191 = vsel %vm189, %v49, 0
    %v194 = vsel %vm189, %v50, 0
    %v197 = vsel %vm189, %v51, 0
    %v200 = vsel %vm189, %v52, 0
    %v203 = vsel %vm189, %v53, 0
    %v206 = vsel %vm189, %v54, 0
    %v209 = vsel %vm189, %v55, 0
    %v212 = vsel %vm189, %v56, 0
    %v215 = vsel %vm189, %v57, 0
    %v218 = vsel %vm189, %v58, 0
    %v221 = vsel %vm189, %v59, 0
    %v224 = vsel %vm189, %v60, 0
    %v227 = vsel %vm189, %v61, 0
    %v230 = vsel %vm189, %v62, 0
    %v233 = vsel %vm189, %v63, 0
    %v236 = vsel %vm189, %v64, 0
    %v239 = vsel %vm189, %v65, 0
    %v242 = vsel %vm189, %v66, 0
    %v245 = vsel %vm189, %v67, 0
    %v248 = vsel %vm189, %v68, 0
    %v251 = vsel %vm189, %v33, 0
    %v254 = vsel %vm189, %v34, 0
    %v257 = vsel %vm189, %v35, 0
    %v260 = vsel %vm189, %v36, 0
    %v263 = vsel %vm189, %v37, 0
    %v266 = vsel %vm189, %v38, 0
    %v269 = vsel %vm189, %v39, 0
    %v272 = vsel %vm189, %v40, 0
    %v275 = vsel %vm189, %v41, 0
    %v278 = vsel %vm189, %v42, 0
    %v281 = vsel %vm189, %v43, 0
    %v284 = vsel %vm189, %v44, 0
    %v287 = vsel %vm189, %v45, 0
    %v290 = vsel %vm189, %v46, 0
    %v293 = vsel %vm189, %v47, 0
    %v296 = vsel %vm189, %v48, 0
    %298 = vmatprep.subr.mxu0 0.0
    %299 = vmatpush1.xpose.msra.mxu0 %v296
    %300 = vmatprep.subr.mxu0 0.0
    %301 = vmatpush1.xpose.msra.mxu0 %v293
    %302 = vmatprep.subr.mxu0 0.0
    %303 = vmatpush1.xpose.msra.mxu0 %v290
    %304 = vmatprep.subr.mxu0 0.0
    %305 = vmatpush1.xpose.msra.mxu0 %v287
    %306 = vmatprep.subr.mxu0 0.0
    %307 = vmatpush1.xpose.msra.mxu0 %v284
    %308 = vmatprep.subr.mxu0 0.0
    %309 = vmatpush1.xpose.msra.mxu0 %v281
    %310 = vmatprep.subr.mxu0 0.0
    %311 = vmatpush1.xpose.msra.mxu0 %v278
    %312 = vmatprep.subr.mxu0 0.0
    %313 = vmatpush1.xpose.msra.mxu0 %v275
    %314 = vmatprep.subr.mxu0 0.0
    %315 = vmatpush1.xpose.msra.mxu0 %v272
    %316 = vmatprep.subr.mxu0 0.0
    %317 = vmatpush1.xpose.msra.mxu0 %v269
    %318 = vmatprep.subr.mxu0 0.0
    %319 = vmatpush1.xpose.msra.mxu0 %v266
    %320 = vmatprep.subr.mxu0 0.0
    %321 = vmatpush1.xpose.msra.mxu0 %v263
    %322 = vmatprep.subr.mxu0 0.0
    %323 = vmatpush1.xpose.msra.mxu0 %v260
    %324 = vmatprep.subr.mxu0 0.0
    %325 = vmatpush1.xpose.msra.mxu0 %v257
    %326 = vmatprep.subr.mxu0 0.0
    %327 = vmatpush1.xpose.msra.mxu0 %v254
    %328 = vmatprep.subr.mxu0 0.0
    %329 = vmatpush1.xpose.msra.mxu0 %v251
    %330 = vmatprep.subr.mxu0 0.0
    %331 = vmatpush2.xpose.msra.mxu0 0.0
    %332 = vmatprep.subr.mxu0 0.0
    %333 = vmatpush2.xpose.msra.mxu0 0.0
    %334 = vmatprep.subr.mxu0 0.0
    %335 = vmatpush2.xpose.msra.mxu0 0.0
    %336 = vmatprep.subr.mxu0 0.0
    %337 = vmatpush2.xpose.msra.mxu0 0.0
    %338 = vmatprep.subr.mxu0 0.0
    %339 = vmatpush2.xpose.msra.mxu0 0.0
    %340 = vmatprep.subr.mxu0 0.0
    %341 = vmatpush2.xpose.msra.mxu0 0.0
    %342 = vmatprep.subr.mxu0 0.0
    %343 = vmatpush2.xpose.msra.mxu0 0.0
    %344 = vmatprep.subr.mxu0 0.0
    %345 = vmatpush2.xpose.msra.mxu0 0.0
    %346 = vmatprep.subr.mxu0 0.0
    %347 = vmatpush2.xpose.msra.mxu0 0.0
    %348 = vmatprep.subr.mxu0 0.0
    %349 = vmatpush2.xpose.msra.mxu0 0.0
    %350 = vmatprep.subr.mxu0 0.0
    %351 = vmatpush2.xpose.msra.mxu0 0.0
    %352 = vmatprep.subr.mxu0 0.0
    %353 = vmatpush2.xpose.msra.mxu0 0.0
    %354 = vmatprep.subr.mxu0 0.0
    %355 = vmatpush2.xpose.msra.mxu0 0.0
    %356 = vmatprep.subr.mxu0 0.0
    %357 = vmatpush2.xpose.msra.mxu0 0.0
    %358 = vmatprep.subr.mxu0 0.0
    %359 = vmatpush2.xpose.msra.mxu0 0.0
    %360 = vmatprep.subr.mxu0 0.0
    %361 = vmatpush2.xpose.msra.mxu0 0.0
    %362 = vmatprep.mubr.f32.mxu0 0.0
    %363 = vmatmul.mubr.f32.gmra.mxu0 %v191
    %v364 = vpop.f32.mrf.mxu0
    %v365 = vadd.f32 %v92, %v364
    %v366 = vpop.f32.mrf.mxu0
    %367 = vmatprep.mubr.f32.mxu0 0.0
    %368 = vmatmul.mubr.f32.gmra.mxu0 %v194
    %v369 = vpop.f32.mrf.mxu0
    %v370 = vadd.f32 %v97, %v369
    %v371 = vpop.f32.mrf.mxu0
    %372 = vmatprep.mubr.f32.mxu0 0.0
    %373 = vmatmul.mubr.f32.gmra.mxu0 %v197
    %v374 = vpop.f32.mrf.mxu0
    %v375 = vadd.f32 %v102, %v374
    %v376 = vpop.f32.mrf.mxu0
    %377 = vmatprep.mubr.f32.mxu0 0.0
    %378 = vmatmul.mubr.f32.gmra.mxu0 %v200
    %v379 = vpop.f32.mrf.mxu0
    %v380 = vadd.f32 %v107, %v379
    %v381 = vpop.f32.mrf.mxu0
    %382 = vmatprep.mubr.f32.mxu0 0.0
    %383 = vmatmul.mubr.f32.gmra.mxu0 %v203
    %v384 = vpop.f32.mrf.mxu0
    %v385 = vadd.f32 %v112, %v384
    %v386 = vpop.f32.mrf.mxu0
    %387 = vmatprep.mubr.f32.mxu0 0.0
    %388 = vmatmul.mubr.f32.gmra.mxu0 %v206
    %v389 = vpop.f32.mrf.mxu0
    %v390 = vadd.f32 %v117, %v389
    %v391 = vpop.f32.mrf.mxu0
    %392 = vmatprep.mubr.f32.mxu0 0.0
    %393 = vmatmul.mubr.f32.gmra.mxu0 %v209
    %v394 = vpop.f32.mrf.mxu0
    %v395 = vadd.f32 %v122, %v394
    %v396 = vpop.f32.mrf.mxu0
    %397 = vmatprep.mubr.f32.mxu0 0.0
    %398 = vmatmul.mubr.f32.gmra.mxu0 %v212
    %v399 = vpop.f32.mrf.mxu0
    %v400 = vadd.f32 %v127, %v399
    %v401 = vpop.f32.mrf.mxu0
    %402 = vmatprep.mubr.f32.mxu0 0.0
    %403 = vmatmul.mubr.f32.gmra.mxu0 %v215
    %v404 = vpop.f32.mrf.mxu0
    %v405 = vadd.f32 %v132, %v404
    %v406 = vpop.f32.mrf.mxu0
    %407 = vmatprep.mubr.f32.mxu0 0.0
    %408 = vmatmul.mubr.f32.gmra.mxu0 %v218
    %v409 = vpop.f32.mrf.mxu0
    %v410 = vadd.f32 %v137, %v409
    %v411 = vpop.f32.mrf.mxu0
    %412 = vmatprep.mubr.f32.mxu0 0.0
    %413 = vmatmul.mubr.f32.gmra.mxu0 %v221
    %v414 = vpop.f32.mrf.mxu0
    %v415 = vadd.f32 %v142, %v414
    %v416 = vpop.f32.mrf.mxu0
    %417 = vmatprep.mubr.f32.mxu0 0.0
    %418 = vmatmul.mubr.f32.gmra.mxu0 %v224
    %v419 = vpop.f32.mrf.mxu0
    %v420 = vadd.f32 %v147, %v419
    %v421 = vpop.f32.mrf.mxu0
    %422 = vmatprep.mubr.f32.mxu0 0.0
    %423 = vmatmul.mubr.f32.gmra.mxu0 %v227
    %v424 = vpop.f32.mrf.mxu0
    %v425 = vadd.f32 %v152, %v424
    %v426 = vpop.f32.mrf.mxu0
    %427 = vmatprep.mubr.f32.mxu0 0.0
    %428 = vmatmul.mubr.f32.gmra.mxu0 %v230
    %v429 = vpop.f32.mrf.mxu0
    %v430 = vadd.f32 %v157, %v429
    %v431 = vpop.f32.mrf.mxu0
    %432 = vmatprep.mubr.f32.mxu0 0.0
    %433 = vmatmul.mubr.f32.gmra.mxu0 %v233
    %v434 = vpop.f32.mrf.mxu0
    %v435 = vadd.f32 %v162, %v434
    %v436 = vpop.f32.mrf.mxu0
    %437 = vmatprep.mubr.f32.mxu0 0.0
    %438 = vmatmul.mubr.f32.gmra.mxu0 %v236
    %v439 = vpop.f32.mrf.mxu0
    %v440 = vadd.f32 %v167, %v439
    %v441 = vpop.f32.mrf.mxu0
    %442 = vmatprep.mubr.f32.mxu0 0.0
    %443 = vmatmul.mubr.f32.gmra.mxu0 %v239
    %v444 = vpop.f32.mrf.mxu0
    %v445 = vadd.f32 %v172, %v444
    %v446 = vpop.f32.mrf.mxu0
    %447 = vmatprep.mubr.f32.mxu0 0.0
    %448 = vmatmul.mubr.f32.gmra.mxu0 %v242
    %v449 = vpop.f32.mrf.mxu0
    %v450 = vadd.f32 %v177, %v449
    %v451 = vpop.f32.mrf.mxu0
    %452 = vmatprep.mubr.f32.mxu0 0.0
    %453 = vmatmul.mubr.f32.gmra.mxu0 %v245
    %v454 = vpop.f32.mrf.mxu0
    %v455 = vadd.f32 %v182, %v454
    %v456 = vpop.f32.mrf.mxu0
    %457 = vmatprep.mubr.f32.mxu0 0.0
    %458 = vmatmul.mubr.f32.gmra.mxu0 %v248
    %v459 = vpop.f32.mrf.mxu0
    %v460 = vadd.f32 %v187, %v459
    %v461 = vpop.f32.mrf.mxu0
    %462 = vdwg.mxu0
    %v463 = vtanh.pop %v365
    %v464 = vtanh.pop %v370
    %v465 = vtanh.pop %v375
    %v466 = vtanh.pop %v380
    %v467 = vtanh.pop %v385
    %v468 = vtanh.pop %v390
    %v469 = vtanh.pop %v395
    %v470 = vtanh.pop %v400
    %v471 = vtanh.pop %v405
    %v472 = vtanh.pop %v410
    %v473 = vtanh.pop %v415
    %v474 = vtanh.pop %v420
    %v475 = vtanh.pop %v425
    %v476 = vtanh.pop %v430
    %v477 = vtanh.pop %v435
    %v478 = vtanh.pop %v440
    %v479 = vtanh.pop %v445
    %v480 = vtanh.pop %v450
    %v481 = vtanh.pop %v455
    %v482 = vtanh.pop %v460
    %v483 = vld [vmem:[%s3] sm:$0xff]
    %v484 = vld [vmem:[%s3 + $0x8] sm:$0xff]
    %v485 = vld [vmem:[%s3 + $0x10] sm:$0xff]
    %v486 = vld [vmem:[%s3 + $0x18] sm:$0xff]
    %v487 = vld [vmem:[%s3 + $0x20] sm:$0xff]
    %v488 = vld [vmem:[%s3 + $0x28] sm:$0xff]
    %v489 = vld [vmem:[%s3 + $0x30] sm:$0xff]
    %v490 = vld [vmem:[%s3 + $0x38] sm:$0xff]
    %v491 = vld [vmem:[%s3 + $0x40] sm:$0xff]
    %v492 = vld [vmem:[%s3 + $0x48] sm:$0xff]
    %v493 = vld [vmem:[%s3 + $0x50] sm:$0xff]
    %v494 = vld [vmem:[%s3 + $0x58] sm:$0xff]
    %v495 = vld [vmem:[%s3 + $0x60] sm:$0xff]
    %v496 = vld [vmem:[%s3 + $0x68] sm:$0xff]
    %v497 = vld [vmem:[%s3 + $0x70] sm:$0xff]
    %v498 = vld [vmem:[%s3 + $0x78] sm:$0xff]
    %v499 = vld [vmem:[%s3 + $0x80] sm:$0xff]
    %v500 = vld [vmem:[%s3 + $0x88] sm:$0xff]
    %v501 = vld [vmem:[%s3 + $0x90] sm:$0xff]
    %v502 = vld [vmem:[%s3 + $0x98] sm:$0xff]
    %v503 = vld [vmem:[%s4] sm:$0xff]
    %v504 = vld [vmem:[%s4 + $0x8] sm:$0xff]
    %v505 = vld [vmem:[%s4 + $0x10] sm:$0xff]
    %v506 = vld [vmem:[%s4 + $0x18] sm:$0xff]
    %v507 = vld [vmem:[%s4 + $0x20] sm:$0xff]
    %v508 = vld [vmem:[%s4 + $0x28] sm:$0xff]
    %v509 = vld [vmem:[%s4 + $0x30] sm:$0xff]
    %v510 = vld [vmem:[%s4 + $0x38] sm:$0xff]
    %v511 = vld [vmem:[%s4 + $0x40] sm:$0xff]
    %v512 = vld [vmem:[%s4 + $0x48] sm:$0xff]
    %514 = vset.pattern.permute.xlu0 0
    %515 = vperm.xlu0 %514, %v503
    %v516 = vpop.permute.xlu0 %515
    %519 = vset.pattern.permute.xlu0 0
    %520 = vperm.xlu0 %519, %v504
    %v521 = vpop.permute.xlu0 %520
    %524 = vset.pattern.permute.xlu0 0
    %525 = vperm.xlu0 %524, %v505
    %v526 = vpop.permute.xlu0 %525
    %529 = vset.pattern.permute.xlu0 0
    %530 = vperm.xlu0 %529, %v506
    %v531 = vpop.permute.xlu0 %530
    %534 = vset.pattern.permute.xlu0 0
    %535 = vperm.xlu0 %534, %v507
    %v536 = vpop.permute.xlu0 %535
    %539 = vset.pattern.permute.xlu0 0
    %540 = vperm.xlu0 %539, %v508
    %v541 = vpop.permute.xlu0 %540
    %544 = vset.pattern.permute.xlu0 0
    %545 = vperm.xlu0 %544, %v509
    %v546 = vpop.permute.xlu0 %545
    %549 = vset.pattern.permute.xlu0 0
    %550 = vperm.xlu0 %549, %v510
    %v551 = vpop.permute.xlu0 %550
    %554 = vset.pattern.permute.xlu0 0
    %555 = vperm.xlu0 %554, %v511
    %v556 = vpop.permute.xlu0 %555
    %559 = vset.pattern.permute.xlu0 0
    %560 = vperm.xlu0 %559, %v512
    %v561 = vpop.permute.xlu0 %560
    %vm563 = vcmask 261120
    %v565 = vsel %vm563, %v484, 0
    %v568 = vsel %vm563, %v486, 0
    %v571 = vsel %vm563, %v488, 0
    %v574 = vsel %vm563, %v490, 0
    %v577 = vsel %vm563, %v492, 0
    %v580 = vsel %vm563, %v494, 0
    %v583 = vsel %vm563, %v496, 0
    %v586 = vsel %vm563, %v498, 0
    %v589 = vsel %vm563, %v500, 0
    %v592 = vsel %vm563, %v502, 0
    %594 = vmatprep.subr.mxu0 0.0
    %595 = vmatpush1.msra.mxu0 %v478
    %596 = vmatprep.subr.mxu0 0.0
    %597 = vmatpush1.msra.mxu0 %v477
    %598 = vmatprep.subr.mxu0 0.0
    %599 = vmatpush1.msra.mxu0 %v476
    %600 = vmatprep.subr.mxu0 0.0
    %601 = vmatpush1.msra.mxu0 %v475
    %602 = vmatprep.subr.mxu0 0.0
    %603 = vmatpush1.msra.mxu0 %v474
    %604 = vmatprep.subr.mxu0 0.0
    %605 = vmatpush1.msra.mxu0 %v473
    %606 = vmatprep.subr.mxu0 0.0
    %607 = vmatpush1.msra.mxu0 %v472
    %608 = vmatprep.subr.mxu0 0.0
    %609 = vmatpush1.msra.mxu0 %v471
    %610 = vmatprep.subr.mxu0 0.0
    %611 = vmatpush1.msra.mxu0 %v470
    %612 = vmatprep.subr.mxu0 0.0
    %613 = vmatpush1.msra.mxu0 %v469
    %614 = vmatprep.subr.mxu0 0.0
    %615 = vmatpush1.msra.mxu0 %v468
    %616 = vmatprep.subr.mxu0 0.0
    %617 = vmatpush1.msra.mxu0 %v467
    %618 = vmatprep.subr.mxu0 0.0
    %619 = vmatpush1.msra.mxu0 %v466
    %620 = vmatprep.subr.mxu0 0.0
    %621 = vmatpush1.msra.mxu0 %v465
    %622 = vmatprep.subr.mxu0 0.0
    %623 = vmatpush1.msra.mxu0 %v464
    %624 = vmatprep.subr.mxu0 0.0
    %625 = vmatpush1.msra.mxu0 %v463
    %626 = vmatprep.subr.mxu0 0.0
    %627 = vmatpush2.msra.mxu0 0.0
    %628 = vmatprep.subr.mxu0 0.0
    %629 = vmatpush2.msra.mxu0 0.0
    %630 = vmatprep.subr.mxu0 0.0
    %631 = vmatpush2.msra.mxu0 0.0
    %632 = vmatprep.subr.mxu0 0.0
    %633 = vmatpush2.msra.mxu0 0.0
    %634 = vmatprep.subr.mxu0 0.0
    %635 = vmatpush2.msra.mxu0 0.0
    %636 = vmatprep.subr.mxu0 0.0
    %637 = vmatpush2.msra.mxu0 0.0
    %638 = vmatprep.subr.mxu0 0.0
    %639 = vmatpush2.msra.mxu0 0.0
    %640 = vmatprep.subr.mxu0 0.0
    %641 = vmatpush2.msra.mxu0 0.0
    %642 = vmatprep.subr.mxu0 0.0
    %643 = vmatpush2.msra.mxu0 0.0
    %644 = vmatprep.subr.mxu0 0.0
    %645 = vmatpush2.msra.mxu0 0.0
    %646 = vmatprep.subr.mxu0 0.0
    %647 = vmatpush2.msra.mxu0 0.0
    %648 = vmatprep.subr.mxu0 0.0
    %649 = vmatpush2.msra.mxu0 0.0
    %650 = vmatprep.subr.mxu0 0.0
    %651 = vmatpush2.msra.mxu0 %v482
    %652 = vmatprep.subr.mxu0 0.0
    %653 = vmatpush2.msra.mxu0 %v481
    %654 = vmatprep.subr.mxu0 0.0
    %655 = vmatpush2.msra.mxu0 %v480
    %656 = vmatprep.subr.mxu0 0.0
    %657 = vmatpush2.msra.mxu0 %v479
    %658 = vmatprep.mubr.f32.mxu0 %v565
    %659 = vmatmul.mubr.f32.gmra.mxu0 %v483
    %v660 = vpop.f32.mrf.mxu0
    %v661 = vadd.f32 %v516, %v660
    %v662 = vpop.f32.mrf.mxu0
    %663 = vmatprep.mubr.f32.mxu0 %v568
    %664 = vmatmul.mubr.f32.gmra.mxu0 %v485
    %v665 = vpop.f32.mrf.mxu0
    %v666 = vadd.f32 %v521, %v665
    %v667 = vpop.f32.mrf.mxu0
    %668 = vmatprep.mubr.f32.mxu0 %v571
    %669 = vmatmul.mubr.f32.gmra.mxu0 %v487
    %v670 = vpop.f32.mrf.mxu0
    %v671 = vadd.f32 %v526, %v670
    %v672 = vpop.f32.mrf.mxu0
    %673 = vmatprep.mubr.f32.mxu0 %v574
    %674 = vmatmul.mubr.f32.gmra.mxu0 %v489
    %v675 = vpop.f32.mrf.mxu0
    %v676 = vadd.f32 %v531, %v675
    %v677 = vpop.f32.mrf.mxu0
    %678 = vmatprep.mubr.f32.mxu0 %v577
    %679 = vmatmul.mubr.f32.gmra.mxu0 %v491
    %v680 = vpop.f32.mrf.mxu0
    %v681 = vadd.f32 %v536, %v680
    %v682 = vpop.f32.mrf.mxu0
    %683 = vmatprep.mubr.f32.mxu0 %v580
    %684 = vmatmul.mubr.f32.gmra.mxu0 %v493
    %v685 = vpop.f32.mrf.mxu0
    %v686 = vadd.f32 %v541, %v685
    %v687 = vpop.f32.mrf.mxu0
    %688 = vmatprep.mubr.f32.mxu0 %v583
    %689 = vmatmul.mubr.f32.gmra.mxu0 %v495
    %v690 = vpop.f32.mrf.mxu0
    %v691 = vadd.f32 %v546, %v690
    %v692 = vpop.f32.mrf.mxu0
    %693 = vmatprep.mubr.f32.mxu0 %v586
    %694 = vmatmul.mubr.f32.gmra.mxu0 %v497
    %v695 = vpop.f32.mrf.mxu0
    %v696 = vadd.f32 %v551, %v695
    %v697 = vpop.f32.mrf.mxu0
    %698 = vmatprep.mubr.f32.mxu0 %v589
    %699 = vmatmul.mubr.f32.gmra.mxu0 %v499
    %v700 = vpop.f32.mrf.mxu0
    %v701 = vadd.f32 %v556, %v700
    %v702 = vpop.f32.mrf.mxu0
    %703 = vmatprep.mubr.f32.mxu0 %v592
    %704 = vmatmul.mubr.f32.gmra.mxu0 %v501
    %v705 = vpop.f32.mrf.mxu0
    %v706 = vadd.f32 %v561, %v705
    %v707 = vpop.f32.mrf.mxu0
    %708 = vdwg.mxu0
    %v709 = vtanh.pop %v661
    %v710 = vtanh.pop %v666
    %v711 = vtanh.pop %v671
    %v712 = vtanh.pop %v676
    %v713 = vtanh.pop %v681
    %v714 = vtanh.pop %v686
    %v715 = vtanh.pop %v691
    %v716 = vtanh.pop %v696
    %v717 = vtanh.pop %v701
    %v718 = vtanh.pop %v706
    %v719 = vld [vmem:[%s5] sm:$0xff]
    %v720 = vld [vmem:[%s5 + $0x8] sm:$0xff]
    %v721 = vld [vmem:[%s5 + $0x10] sm:$0xff]
    %v722 = vld [vmem:[%s5 + $0x18] sm:$0xff]
    %v723 = vld [vmem:[%s5 + $0x20] sm:$0xff]
    %v724 = vld [vmem:[%s6] sm:$0xff]
    %v725 = vld [vmem:[%s6 + $0x8] sm:$0xff]
    %v726 = vld [vmem:[%s6 + $0x10] sm:$0xff]
    %v727 = vld [vmem:[%s6 + $0x18] sm:$0xff]
    %v728 = vld [vmem:[%s6 + $0x20] sm:$0xff]
    %730 = vset.pattern.permute.xlu0 0
    %731 = vperm.xlu0 %730, %v724
    %v732 = vpop.permute.xlu0 %731
    %735 = vset.pattern.permute.xlu0 0
    %736 = vperm.xlu0 %735, %v725
    %v737 = vpop.permute.xlu0 %736
    %740 = vset.pattern.permute.xlu0 0
    %741 = vperm.xlu0 %740, %v726
    %v742 = vpop.permute.xlu0 %741
    %745 = vset.pattern.permute.xlu0 0
    %746 = vperm.xlu0 %745, %v727
    %v747 = vpop.permute.xlu0 %746
    %750 = vset.pattern.permute.xlu0 0
    %751 = vperm.xlu0 %750, %v728
    %v752 = vpop.permute.xlu0 %751
    %vm754 = vcmask 654336
    %v756 = vsel %vm754, %v719, 0
    %v759 = vsel %vm754, %v720, 0
    %v762 = vsel %vm754, %v721, 0
    %v765 = vsel %vm754, %v722, 0
    %v768 = vsel %vm754, %v723, 0
    %770 = vmatprep.subr.mxu0 0.0
    %771 = vmatpush1.msra.mxu0 0.0
    %772 = vmatprep.subr.mxu0 0.0
    %773 = vmatpush1.msra.mxu0 0.0
    %774 = vmatprep.subr.mxu0 0.0
    %775 = vmatpush1.msra.mxu0 0.0
    %776 = vmatprep.subr.mxu0 0.0
    %777 = vmatpush1.msra.mxu0 0.0
    %778 = vmatprep.subr.mxu0 0.0
    %779 = vmatpush1.msra.mxu0 0.0
    %780 = vmatprep.subr.mxu0 0.0
    %781 = vmatpush1.msra.mxu0 0.0
    %782 = vmatprep.subr.mxu0 0.0
    %783 = vmatpush1.msra.mxu0 %v718
    %784 = vmatprep.subr.mxu0 0.0
    %785 = vmatpush1.msra.mxu0 %v717
    %786 = vmatprep.subr.mxu0 0.0
    %787 = vmatpush1.msra.mxu0 %v716
    %788 = vmatprep.subr.mxu0 0.0
    %789 = vmatpush1.msra.mxu0 %v715
    %790 = vmatprep.subr.mxu0 0.0
    %791 = vmatpush1.msra.mxu0 %v714
    %792 = vmatprep.subr.mxu0 0.0
    %793 = vmatpush1.msra.mxu0 %v713
    %794 = vmatprep.subr.mxu0 0.0
    %795 = vmatpush1.msra.mxu0 %v712
    %796 = vmatprep.subr.mxu0 0.0
    %797 = vmatpush1.msra.mxu0 %v711
    %798 = vmatprep.subr.mxu0 0.0
    %799 = vmatpush1.msra.mxu0 %v710
    %800 = vmatprep.subr.mxu0 0.0
    %801 = vmatpush1.msra.mxu0 %v709
    %802 = vmatprep.subr.mxu0 0.0
    %803 = vmatpush2.msra.mxu0 0.0
    %804 = vmatprep.subr.mxu0 0.0
    %805 = vmatpush2.msra.mxu0 0.0
    %806 = vmatprep.subr.mxu0 0.0
    %807 = vmatpush2.msra.mxu0 0.0
    %808 = vmatprep.subr.mxu0 0.0
    %809 = vmatpush2.msra.mxu0 0.0
    %810 = vmatprep.subr.mxu0 0.0
    %811 = vmatpush2.msra.mxu0 0.0
    %812 = vmatprep.subr.mxu0 0.0
    %813 = vmatpush2.msra.mxu0 0.0
    %814 = vmatprep.subr.mxu0 0.0
    %815 = vmatpush2.msra.mxu0 0.0
    %816 = vmatprep.subr.mxu0 0.0
    %817 = vmatpush2.msra.mxu0 0.0
    %818 = vmatprep.subr.mxu0 0.0
    %819 = vmatpush2.msra.mxu0 0.0
    %820 = vmatprep.subr.mxu0 0.0
    %821 = vmatpush2.msra.mxu0 0.0
    %822 = vmatprep.subr.mxu0 0.0
    %823 = vmatpush2.msra.mxu0 0.0
    %824 = vmatprep.subr.mxu0 0.0
    %825 = vmatpush2.msra.mxu0 0.0
    %826 = vmatprep.subr.mxu0 0.0
    %827 = vmatpush2.msra.mxu0 0.0
    %828 = vmatprep.subr.mxu0 0.0
    %829 = vmatpush2.msra.mxu0 0.0
    %830 = vmatprep.subr.mxu0 0.0
    %831 = vmatpush2.msra.mxu0 0.0
    %832 = vmatprep.subr.mxu0 0.0
    %833 = vmatpush2.msra.mxu0 0.0
    %834 = vmatprep.mubr.f32.mxu0 0.0
    %835 = vmatmul.mubr.f32.gmra.mxu0 %v756
    %v836 = vpop.f32.mrf.mxu0
    %v837 = vadd.f32 %v732, %v836
    %v838 = vpop.f32.mrf.mxu0
    %839 = vmatprep.mubr.f32.mxu0 0.0
    %840 = vmatmul.mubr.f32.gmra.mxu0 %v759
    %v841 = vpop.f32.mrf.mxu0
    %v842 = vadd.f32 %v737, %v841
    %v843 = vpop.f32.mrf.mxu0
    %844 = vmatprep.mubr.f32.mxu0 0.0
    %845 = vmatmul.mubr.f32.gmra.mxu0 %v762
    %v846 = vpop.f32.mrf.mxu0
    %v847 = vadd.f32 %v742, %v846
    %v848 = vpop.f32.mrf.mxu0
    %849 = vmatprep.mubr.f32.mxu0 0.0
    %850 = vmatmul.mubr.f32.gmra.mxu0 %v765
    %v851 = vpop.f32.mrf.mxu0
    %v852 = vadd.f32 %v747, %v851
    %v853 = vpop.f32.mrf.mxu0
    %854 = vmatprep.mubr.f32.mxu0 0.0
    %855 = vmatmul.mubr.f32.gmra.mxu0 %v768
    %v856 = vpop.f32.mrf.mxu0
    %v857 = vadd.f32 %v752, %v856
    %v858 = vpop.f32.mrf.mxu0
    %859 = vdwg.mxu0
    %v860 = vtanh.pop %v837
    %v861 = vtanh.pop %v842
    %v862 = vtanh.pop %v847
    %v863 = vtanh.pop %v852
    %v864 = vtanh.pop %v857
    %v865 = vld [vmem:[%s7] sm:$0xf]
    %v866 = vld [vmem:[%s8] sm:$0xf]
    %868 = vset.pattern.permute.xlu0 0
    %869 = vperm.xlu0 %868, %v866
    %v870 = vpop.permute.xlu0 %869
    %vm872 = vcmask 326656
    %v874 = vsel %vm872, %v865, 0
    %876 = vmatprep.subr.mxu0 0.0
    %877 = vmatpush1.msra.mxu0 0.0
    %878 = vmatprep.subr.mxu0 0.0
    %879 = vmatpush1.msra.mxu0 0.0
    %880 = vmatprep.subr.mxu0 0.0
    %881 = vmatpush1.msra.mxu0 0.0
    %882 = vmatprep.subr.mxu0 0.0
    %883 = vmatpush1.msra.mxu0 0.0
    %884 = vmatprep.subr.mxu0 0.0
    %885 = vmatpush1.msra.mxu0 0.0
    %886 = vmatprep.subr.mxu0 0.0
    %887 = vmatpush1.msra.mxu0 0.0
    %888 = vmatprep.subr.mxu0 0.0
    %889 = vmatpush1.msra.mxu0 0.0
    %890 = vmatprep.subr.mxu0 0.0
    %891 = vmatpush1.msra.mxu0 0.0
    %892 = vmatprep.subr.mxu0 0.0
    %893 = vmatpush1.msra.mxu0 0.0
    %894 = vmatprep.subr.mxu0 0.0
    %895 = vmatpush1.msra.mxu0 0.0
    %896 = vmatprep.subr.mxu0 0.0
    %897 = vmatpush1.msra.mxu0 0.0
    %898 = vmatprep.subr.mxu0 0.0
    %899 = vmatpush1.msra.mxu0 %v864
    %900 = vmatprep.subr.mxu0 0.0
    %901 = vmatpush1.msra.mxu0 %v863
    %902 = vmatprep.subr.mxu0 0.0
    %903 = vmatpush1.msra.mxu0 %v862
    %904 = vmatprep.subr.mxu0 0.0
    %905 = vmatpush1.msra.mxu0 %v861
    %906 = vmatprep.subr.mxu0 0.0
    %907 = vmatpush1.msra.mxu0 %v860
    %908 = vmatprep.subr.mxu0 0.0
    %909 = vmatpush2.msra.mxu0 0.0
    %910 = vmatprep.subr.mxu0 0.0
    %911 = vmatpush2.msra.mxu0 0.0
    %912 = vmatprep.subr.mxu0 0.0
    %913 = vmatpush2.msra.mxu0 0.0
    %914 = vmatprep.subr.mxu0 0.0
    %915 = vmatpush2.msra.mxu0 0.0
    %916 = vmatprep.subr.mxu0 0.0
    %917 = vmatpush2.msra.mxu0 0.0
    %918 = vmatprep.subr.mxu0 0.0
    %919 = vmatpush2.msra.mxu0 0.0
    %920 = vmatprep.subr.mxu0 0.0
    %921 = vmatpush2.msra.mxu0 0.0
    %922 = vmatprep.subr.mxu0 0.0
    %923 = vmatpush2.msra.mxu0 0.0
    %924 = vmatprep.subr.mxu0 0.0
    %925 = vmatpush2.msra.mxu0 0.0
    %926 = vmatprep.subr.mxu0 0.0
    %927 = vmatpush2.msra.mxu0 0.0
    %928 = vmatprep.subr.mxu0 0.0
    %929 = vmatpush2.msra.mxu0 0.0
    %930 = vmatprep.subr.mxu0 0.0
    %931 = vmatpush2.msra.mxu0 0.0
    %932 = vmatprep.subr.mxu0 0.0
    %933 = vmatpush2.msra.mxu0 0.0
    %934 = vmatprep.subr.mxu0 0.0
    %935 = vmatpush2.msra.mxu0 0.0
    %936 = vmatprep.subr.mxu0 0.0
    %937 = vmatpush2.msra.mxu0 0.0
    %938 = vmatprep.subr.mxu0 0.0
    %939 = vmatpush2.msra.mxu0 0.0
    %940 = vmatprep.mubr.f32.mxu0 0.0
    %941 = vmatmul.mubr.f32.gmra.mxu0 %v874
    %v942 = vpop.f32.mrf.mxu0
    %v943 = vadd.f32 %v870, %v942
    %v944 = vpop.f32.mrf.mxu0
    %945 = vdwg.mxu0
    %v946 = vtanh.pop %v943
    %947 = vst [vmem:[#allocation2] sm:$0xf] %v946
    // Predicated region
    $region38: #{tpu_custom_call.1} parent=1 // pred_check
      _
    $region39: #{tpu_custom_call.1} parent=1 // pred_check_branch
      %949 = sbr.rel (0) target = $region41
    $region40: #{tpu_custom_call.1} parent=1 // pred_region
      %s951 = ssub.s32 64, 64
      %952 = vsyncadd [#allocation3], %s951
      %s954 = sshll.u32 [#allocation2], 4
      %s955 = int_to_ptr.vmem [resolvable:$true] %s954
      %957 = dma.vmem_to_hbm [thread:$0]  %s955, 64, %s9, [#allocation3]
    $region41: #{tpu_custom_call.1} parent=1 // pred_fallthru
      _
    // Predicated region
    $region42: #{tpu_custom_call.1} parent=1 // pred_check
      _
    $region43: #{tpu_custom_call.1} parent=1 // pred_check_branch
      %959 = sbr.rel (0) target = $region45
    $region44: #{tpu_custom_call.1} parent=1 // pred_region
      %960 = dma.done [#allocation3], 64
    $region45: #{tpu_custom_call.1} parent=1 // pred_fallthru
      _
    %961 = vsyncpa [#allocation3], 1

</llo_original>
